<compile_context>
chip_gen: v5e
topology: v5e:2x2
jax: 0.10.0
libtpu: 0.0.40
codegen_flags: <defaults>
</compile_context>

<pallas_src>
import jax
import jax.numpy as jnp
from jax.experimental import pallas as pl
from jax.experimental.pallas import tpu as pltpu


LANE = 128      # lane width: class dim padded to a multiple of this
SUBLANE = 8     # f32 sublane count: batch (M) dim padded to a multiple of this


def ensemble_kernel(fcw_ref, x_ref, w_ref, beff_ref, o_ref):
    """Grid step s: one subnet matmul + Conv1d(S,1,1)-weighted accumulation.

    out[b, c] = sum_s fc_w[s] * (x @ W_s)[b, c]  +  (fc_w @ b)[c]
    The output block is VMEM-resident across the S grid axis (constant
    index_map), so we accumulate straight into o_ref (f32) — no scratch.
    """
    s = pl.program_id(0)

    @pl.when(s == 0)
    def _init():
        o_ref[...] = jnp.zeros_like(o_ref)

    # (B_pad, D) @ (D, C_pad) on the MXU: bf16 operands, f32 accumulation.
    logits = jnp.dot(x_ref[...], w_ref[...], preferred_element_type=jnp.float32)

    # Conv1d(S, 1, 1, bias=False) ensemble weight for this subnet (SMEM scalar).
    o_ref[...] += fcw_ref[s] * logits

    @pl.when(s == pl.num_programs(0) - 1)
    def _finalize():
        o_ref[...] += beff_ref[...]        # pre-folded weighted bias, added once


def prepare_ensemble_params(subnet_w, subnet_b, fc_w, *, lane=LANE):
    """One-time weight prep (weights are static across calls).

    Pads only the class dim to a lane-dense multiple of 128 and casts to bf16;
    no transpose/reshape copy is materialized.
    """
    S, D, C = subnet_w.shape
    C_pad = pl.cdiv(C, lane) * lane
    w_pad = jnp.pad(subnet_w, ((0, 0), (0, 0), (0, C_pad - C))).astype(jnp.bfloat16)
    # Pre-fold the Conv1d weights into the bias: b_eff[c] = sum_s fc_w[s]*b_s[c].
    b_eff = jnp.pad(fc_w @ subnet_b, (0, C_pad - C)).reshape(1, C_pad)
    return w_pad, b_eff.astype(jnp.float32), fc_w.astype(jnp.float32)


def ensemble_forward(x_nchw, w_pad, b_eff, fc_w, num_classes):
    """x_nchw: (B, Cin, H, W) f32; prepared params from prepare_ensemble_params."""
    B = x_nchw.shape[0]
    S, D, C_pad = w_pad.shape
    B_pad = pl.cdiv(B, SUBLANE) * SUBLANE

    # Row-major NCHW flatten (matches torch flatten); bf16 for the MXU; pad the
    # batch (M) dim to a sublane-dense multiple of 8 -> unmasked stores.
    x_flat = x_nchw.reshape(B, D).astype(jnp.bfloat16)
    x_flat = jnp.pad(x_flat, ((0, B_pad - B), (0, 0)))

    grid_spec = pltpu.PrefetchScalarGridSpec(
        num_scalar_prefetch=1,                 # fc_w -> SMEM scalars
        grid=(S,),                             # reduction over subnets
        in_specs=[
            pl.BlockSpec((B_pad, D), lambda s, fcw: (0, 0)),            # x (bf16)
            pl.BlockSpec((None, D, C_pad), lambda s, fcw: (s, 0, 0)),   # W_s (bf16)
            pl.BlockSpec((1, C_pad), lambda s, fcw: (0, 0)),            # bias (f32)
        ],
        out_specs=pl.BlockSpec((B_pad, C_pad), lambda s, fcw: (0, 0)),
    )

    cost = pl.CostEstimate(
        flops=2 * B_pad * D * C_pad * S,
        transcendentals=0,
        bytes_accessed=(x_flat.size * 2 + w_pad.size * 2
                        + b_eff.size * 4 + fc_w.size * 4 + B_pad * C_pad * 4),
    )

    out_pad = pl.pallas_call(
        ensemble_kernel,
        out_shape=jax.ShapeDtypeStruct((B_pad, C_pad), jnp.float32),
        grid_spec=grid_spec,
        compiler_params=pltpu.CompilerParams(
            # S is a reduction axis (output accumulates across it).  At real
            # sizes, add leading "parallel" tile axes over B / C_pad to use
            # both v7x TensorCores and re-derive blocks against 64 MiB VMEM;
            # here each weight block is only 256 KiB bf16.
            dimension_semantics=("arbitrary",),
            vmem_limit_bytes=32 * 1024 * 1024,
        ),
        cost_estimate=cost,
    )(fc_w, x_flat, w_pad, b_eff)

    return out_pad[:B, :num_classes]           # strip sublane/lane padding


def reference_forward(x_nchw, subnet_w, subnet_b, fc_w):
    """Pure-JAX f32 reference mirroring the PyTorch forward."""
    B = x_nchw.shape[0]
    S, D, C = subnet_w.shape
    x_flat = x_nchw.reshape(B, D)
    # stack subnet outputs along dim=1 -> (B, S, C)
    sub_outs = jnp.einsum("bd,sdc->bsc", x_flat, subnet_w) + subnet_b[None, :, :]
    # Conv1d(S, 1, 1, bias=False): weighted sum over the subnet axis -> (B, C)
    return jnp.einsum("bsc,s->bc", sub_outs, fc_w)


if __name__ == "__main__":
    key = jax.random.PRNGKey(0)
    k_x, k_w, k_b, k_f = jax.random.split(key, 4)

    # Small shapes consistent with the module: NCHW image input, S subnets,
    # each producing C class logits.
    B, Cin, H, W = 2, 4, 16, 16
    S = 3            # number of subnets in the ensemble
    C = 10           # num_classes per subnet
    D = Cin * H * W  # 1024

    x = jax.random.normal(k_x, (B, Cin, H, W), dtype=jnp.float32)
    subnet_w = jax.random.normal(k_w, (S, D, C), dtype=jnp.float32) * 0.02
    subnet_b = jax.random.normal(k_b, (S, C), dtype=jnp.float32) * 0.1
    fc_w = jax.random.normal(k_f, (S,), dtype=jnp.float32)  # Conv1d(S,1,1) weight

    # Quantize the matmul operands to bf16-representable values up front so the
    # bf16-MXU kernel and the f32 reference consume identical inputs (the
    # kernel-side bf16 cast is then lossless; only f32-accumulation order differs).
    x = x.astype(jnp.bfloat16).astype(jnp.float32)
    subnet_w = subnet_w.astype(jnp.bfloat16).astype(jnp.float32)

    # One-time weight prep (static across calls), then the fused forward.
    w_pad, b_eff, fcw32 = prepare_ensemble_params(subnet_w, subnet_b, fc_w)
    out = ensemble_forward(x, w_pad, b_eff, fcw32, C)
    out = jax.block_until_ready(out)

    ref = reference_forward(x, subnet_w, subnet_b, fc_w)
    assert out.shape == (B, C), out.shape
    assert jnp.allclose(out, ref, atol=1e-3, rtol=1e-3), (
        f"max abs err {jnp.max(jnp.abs(out - ref))}")

    print("KERNEL_OK")
</pallas_src>

<mosaic_0001>
module attributes {stable_mosaic.version = 11 : i64} {
  func.func @ensemble_kernel(%arg0: i32, %arg1: memref<3xf32, #tpu.memory_space<smem>>, %arg2: memref<8x1024xbf16, #tpu.memory_space<vmem>>, %arg3: memref<1x1024x128xbf16, #tpu.memory_space<vmem>>, %arg4: memref<1x128xf32, #tpu.memory_space<vmem>>, %arg5: memref<8x128xf32, #tpu.memory_space<vmem>>) attributes {dimension_semantics = [#tpu.dimension_semantics<arbitrary>], iteration_bounds = array<i64: 3>, scalar_prefetch = 1 : i64, scratch_operands = 0 : i64, tpu.core_type = #tpu.core_type<tc>, window_params = [{pipeline_mode = #tpu.pipeline_mode<synchronous>, transform_indices = @transform_0, window_bounds = array<i64: 8, 1024>}, {transform_indices = @transform_1, window_bounds = array<i64: 1, 1024, 128>}, {pipeline_mode = #tpu.pipeline_mode<synchronous>, transform_indices = @transform_2, window_bounds = array<i64: 1, 128>}, {pipeline_mode = #tpu.pipeline_mode<synchronous>, transform_indices = @transform_3, window_bounds = array<i64: 8, 128>}]} {
    %c0_i32 = arith.constant 0 : i32
    %0 = arith.cmpi eq, %arg0, %c0_i32 : i32
    %1 = arith.extui %0 : i1 to i32
    %c0_i32_0 = arith.constant 0 : i32
    %2 = arith.cmpi ne, %1, %c0_i32_0 : i32
    scf.if %2 {
      %cst_10 = arith.constant 0.000000e+00 : f32
      %17 = vector.broadcast %cst_10 : f32 to vector<8x128xf32>
      %c0_11 = arith.constant 0 : index
      %c0_12 = arith.constant 0 : index
      %18 = vector.load %arg5[%c0_11, %c0_12] : memref<8x128xf32, #tpu.memory_space<vmem>>, vector<8x128xf32>
      tpu.vector_store %arg5[%c0_11, %c0_12], %17 {strides = array<i32>} : memref<8x128xf32, #tpu.memory_space<vmem>>, vector<8x128xf32>,
    } else {
    }
    %c0 = arith.constant 0 : index
    %c0_1 = arith.constant 0 : index
    %3 = vector.load %arg2[%c0, %c0_1] : memref<8x1024xbf16, #tpu.memory_space<vmem>>, vector<8x1024xbf16>
    %c0_2 = arith.constant 0 : index
    %c0_3 = arith.constant 0 : index
    %c0_4 = arith.constant 0 : index
    %4 = vector.load %arg3[%c0_2, %c0_3, %c0_4] : memref<1x1024x128xbf16, #tpu.memory_space<vmem>>, vector<1x1024x128xbf16>
    %5 = vector.shape_cast %4 : vector<1x1024x128xbf16> to vector<1024x128xbf16>
    %cst = arith.constant dense<0.000000e+00> : vector<8x128xf32>
    %6 = tpu.matmul %3, %5, %cst {dimension_numbers = #tpu.dot_dimension_numbers<[1], [0], [0], [1], [0, 0, 1, 1], [], []>} : vector<8x1024xbf16>, vector<1024x128xbf16>, vector<8x128xf32> -> vector<8x128xf32>
    %c0_5 = arith.constant 0 : index
    %c0_6 = arith.constant 0 : index
    %7 = vector.load %arg5[%c0_5, %c0_6] : memref<8x128xf32, #tpu.memory_space<vmem>>, vector<8x128xf32>
    %8 = arith.index_cast %arg0 : i32 to index
    %9 = memref.load %arg1[%8] : memref<3xf32, #tpu.memory_space<smem>>
    %10 = vector.broadcast %9 : f32 to vector<8x128xf32>
    %11 = arith.mulf %10, %6 : vector<8x128xf32>
    %12 = arith.addf %7, %11 : vector<8x128xf32>
    %c0_7 = arith.constant 0 : index
    %c0_8 = arith.constant 0 : index
    %13 = vector.load %arg5[%c0_7, %c0_8] : memref<8x128xf32, #tpu.memory_space<vmem>>, vector<8x128xf32>
    tpu.vector_store %arg5[%c0_7, %c0_8], %12 {strides = array<i32>} : memref<8x128xf32, #tpu.memory_space<vmem>>, vector<8x128xf32>,
    %c2_i32 = arith.constant 2 : i32
    %14 = arith.cmpi eq, %arg0, %c2_i32 : i32
    %15 = arith.extui %14 : i1 to i32
    %c0_i32_9 = arith.constant 0 : i32
    %16 = arith.cmpi ne, %15, %c0_i32_9 : i32
    scf.if %16 {
      %c0_10 = arith.constant 0 : index
      %c0_11 = arith.constant 0 : index
      %17 = vector.load %arg5[%c0_10, %c0_11] : memref<8x128xf32, #tpu.memory_space<vmem>>, vector<8x128xf32>
      %c0_12 = arith.constant 0 : index
      %c0_13 = arith.constant 0 : index
      %18 = vector.load %arg4[%c0_12, %c0_13] : memref<1x128xf32, #tpu.memory_space<vmem>>, vector<1x128xf32>
      %19 = vector.broadcast %18 : vector<1x128xf32> to vector<8x128xf32>
      %20 = arith.addf %17, %19 : vector<8x128xf32>
      %c0_14 = arith.constant 0 : index
      %c0_15 = arith.constant 0 : index
      %21 = vector.load %arg5[%c0_14, %c0_15] : memref<8x128xf32, #tpu.memory_space<vmem>>, vector<8x128xf32>
      tpu.vector_store %arg5[%c0_14, %c0_15], %20 {strides = array<i32>} : memref<8x128xf32, #tpu.memory_space<vmem>>, vector<8x128xf32>,
    } else {
    }
    return
  }
  func.func @transform_0(%arg0: i32, %arg1: memref<3xf32, #tpu.memory_space<smem>>) -> (i32, i32) {
    %c0_i32 = arith.constant 0 : i32
    %c0_i32_0 = arith.constant 0 : i32
    %c0_i32_1 = arith.constant 0 : i32
    return %c0_i32, %c0_i32_0 : i32, i32
  }
  func.func @transform_1(%arg0: i32, %arg1: memref<3xf32, #tpu.memory_space<smem>>) -> (i32, i32, i32) {
    %c0_i32 = arith.constant 0 : i32
    %c0_i32_0 = arith.constant 0 : i32
    %c0_i32_1 = arith.constant 0 : i32
    return %arg0, %c0_i32, %c0_i32_0 : i32, i32, i32
  }
  func.func @transform_2(%arg0: i32, %arg1: memref<3xf32, #tpu.memory_space<smem>>) -> (i32, i32) {
    %c0_i32 = arith.constant 0 : i32
    %c0_i32_0 = arith.constant 0 : i32
    %c0_i32_1 = arith.constant 0 : i32
    return %c0_i32, %c0_i32_0 : i32, i32
  }
  func.func @transform_3(%arg0: i32, %arg1: memref<3xf32, #tpu.memory_space<smem>>) -> (i32, i32) {
    %c0_i32 = arith.constant 0 : i32
    %c0_i32_0 = arith.constant 0 : i32
    %c0_i32_1 = arith.constant 0 : i32
    return %c0_i32, %c0_i32_0 : i32, i32
  }
}

</mosaic_0001>

<llo_original>
// kernel: tpu_custom_call.1
$region0: #{tpu_custom_call.1}
  #allocation0 [shape = 'u32[]', space=smem, size = 0x4, offset = 0x4, fixed_abs, tag = 'smem constant byte address 0x4 - core index']
  #allocation1 [shape = 'u32[72,128]{1,0:T(1,128)}', space=vmem, size = 0x9000, scoped, tag = 'internal scratch']
  #allocation2 [shape = 's32[1]{0}', space=sflag, size = 0x4, scoped, tag = 'scoped memory for tpu_custom_call.1']
  #allocation3 [shape = 'u8[512]{0}', space=smem, size = 0x200, scoped, tag = 'prefetched SMEM operand 0']
  %s0 = inlined_call_operand.hbm [shape: f32[3], index: 0, kind: input, shape index: {}]
  %s1 = inlined_call_operand.hbm [shape: bf16[8,1024], index: 1, kind: input, shape index: {}]
  %s2 = inlined_call_operand.hbm [shape: bf16[3,1024,128], index: 2, kind: input, shape index: {}]
  %s3 = inlined_call_operand.vmem [shape: f32[1,128], index: 3, kind: input, shape index: {}]
  %s4 = inlined_call_operand.hbm [shape: f32[8,128], index: 4, kind: output, shape index: {}]
  %s5 = sld [smem:[#allocation0]]
  $region61: #{tpu_custom_call.1} parent=0
    _
  %s7 = ssub.s32 1, %s5
  %s8 = scalar_select 0, %s7, %s5
  %s10 = sshll.u32 %s0, 4
  %s11 = int_to_ptr.hbm [resolvable:$true] %s10
  %13 = dma.hbm_to_smem %s11, 16, [#allocation3], [#allocation2]
  %15 = dma.done [#allocation2], 16
  %16 = sfence
  $region1: #{tpu_custom_call.1} parent=0
    #allocation4 [shape = 'u8[16384]{0}', space=vmem, size = 0x4000, scoped, tag = 'input window, operand 1, single buffered']
    #allocation5 [shape = 's32[2]{0}', space=sflag, size = 0x8, scoped, tag = 'scoped memory for tpu_custom_call.1']
    #allocation6 [shape = 's32[2]{0}', space=sflag, size = 0x8, scoped, tag = 'scoped memory for tpu_custom_call.1']
    #allocation7 [shape = 'u8[524288]{0}', space=vmem, size = 0x80000, scoped, tag = 'input window, operand 2']
    #allocation8 [shape = 's32[2]{0}', space=sflag, size = 0x8, scoped, tag = 'scoped memory for tpu_custom_call.1']
    #allocation9 [shape = 'u8[4096]{0}', space=vmem, size = 0x1000, scoped, tag = 'output window, operand 0, single buffered']
    %17 = vsyncpa [#allocation5], 0
    %18 = vsyncpa [#allocation8], 0
    %s19 = scalar_lea.sflag [#allocation8], 1
    %20 = vsyncpa %s19, 0
    %21 = vsyncpa [#allocation6], 0
    loop: start=0, step=1, limit=5
    $region2: #{tpu_custom_call.1} parent=1 // loop_pre_header
      _
    $region3: #{tpu_custom_call.1} parent=1 // loop_header
      %s23 = sphi 0, %s27
      %p24 = scmp.ge.s32.totalorder %s23, 5
      %s31 = sphi 0, %s31
      %s33 = sphi 0, %s31
      %s34 = sphi 0, %s33
      %s48 = sphi 0, %s34
      %s54 = sphi 0, %s56
      %s57 = sphi 0, %s54
      %s58 = sphi 0, %s57
      %s74 = sphi 0, %s58
      %s78 = sphi 0, %s78
      %s80 = sphi 0, %s78
      %s81 = sphi 0, %s80
      %s95 = sphi 0, %s81
      %s99 = sphi 0, %s99
      %s101 = sphi 0, %s99
      %s102 = sphi 0, %s101
      %s116 = sphi 0, %s102
    $region4: #{tpu_custom_call.1} parent=1 // loop_header_branch
      %26 = sbr.rel (%p24) target = $region8
    $region5: #{tpu_custom_call.1} parent=1 // loop_body
      %s28 = ssub.s32 %s23, 1
      %s29 = ssub.s32 %s23, 2
      %s30 = sadd.s32 %s23, 1
      %s32 = sadd.s32 %s31, 1
      %p35 = scmp.eq.s32.totalorder %s23, 2
      %p36 = scmp.ne.s32.totalorder %s31, %s33
      %p37 = scmp.eq.s32.totalorder %s23, 0
      %p38 = por %p36, %p37
      %p39 = scmp.ne.s32.totalorder %s31, %s33
      %p40 = scmp.eq.s32.totalorder %s28, 2
      %p41 = por %p39, %p40
      %p42 = scmp.ne.s32.totalorder %s33, %s34
      %p43 = scmp.eq.s32.totalorder %s28, 0
      %p44 = por %p42, %p43
      %p45 = scmp.ne.s32.totalorder %s33, %s34
      %p46 = scmp.eq.s32.totalorder %s29, 2
      %p47 = por %p45, %p46
      %p49 = scmp.ne.s32.totalorder %s34, %s48
      %p50 = scmp.eq.s32.totalorder %s29, 0
      %p51 = por %p49, %p50
      %s52 = ssub.s32 %s23, %s30
      %p53 = scmp.eq.s32.totalorder %s52, 0
      %s55 = sadd.s32 %s54, 1
      %s56 = scalar_select %p53, %s54, %s55
      %p59 = pneg %p53
      %p60 = scmp.eq.s32.totalorder %s23, 2
      %p61 = por %p59, %p60
      %p62 = scmp.ne.s32.totalorder %s54, %s57
      %p63 = scmp.eq.s32.totalorder %s23, 0
      %p64 = por %p62, %p63
      %p65 = scmp.ne.s32.totalorder %s54, %s57
      %p66 = scmp.eq.s32.totalorder %s28, 2
      %p67 = por %p65, %p66
      %p68 = scmp.ne.s32.totalorder %s57, %s58
      %p69 = scmp.eq.s32.totalorder %s28, 0
      %p70 = por %p68, %p69
      %p71 = scmp.ne.s32.totalorder %s57, %s58
      %p72 = scmp.eq.s32.totalorder %s29, 2
      %p73 = por %p71, %p72
      %p75 = scmp.ne.s32.totalorder %s58, %s74
      %p76 = scmp.eq.s32.totalorder %s29, 0
      %p77 = por %p75, %p76
      %s79 = sadd.s32 %s78, 1
      %p82 = scmp.eq.s32.totalorder %s23, 2
      %p83 = scmp.ne.s32.totalorder %s78, %s80
      %p84 = scmp.eq.s32.totalorder %s23, 0
      %p85 = por %p83, %p84
      %p86 = scmp.ne.s32.totalorder %s78, %s80
      %p87 = scmp.eq.s32.totalorder %s28, 2
      %p88 = por %p86, %p87
      %p89 = scmp.ne.s32.totalorder %s80, %s81
      %p90 = scmp.eq.s32.totalorder %s28, 0
      %p91 = por %p89, %p90
      %p92 = scmp.ne.s32.totalorder %s80, %s81
      %p93 = scmp.eq.s32.totalorder %s29, 2
      %p94 = por %p92, %p93
      %p96 = scmp.ne.s32.totalorder %s81, %s95
      %p97 = scmp.eq.s32.totalorder %s29, 0
      %p98 = por %p96, %p97
      %s100 = sadd.s32 %s99, 1
      %p103 = scmp.eq.s32.totalorder %s23, 2
      %p104 = scmp.ne.s32.totalorder %s99, %s101
      %p105 = scmp.eq.s32.totalorder %s23, 0
      %p106 = por %p104, %p105
      %p107 = scmp.ne.s32.totalorder %s99, %s101
      %p108 = scmp.eq.s32.totalorder %s28, 2
      %p109 = por %p107, %p108
      %p110 = scmp.ne.s32.totalorder %s101, %s102
      %p111 = scmp.eq.s32.totalorder %s28, 0
      %p112 = por %p110, %p111
      %p113 = scmp.ne.s32.totalorder %s101, %s102
      %p114 = scmp.eq.s32.totalorder %s29, 2
      %p115 = por %p113, %p114
      %p117 = scmp.ne.s32.totalorder %s102, %s116
      %p118 = scmp.eq.s32.totalorder %s29, 0
      %p119 = por %p117, %p118
      %p120 = scmp.le.s32.totalorder 1, %s23
      %p121 = scmp.lt.s32.totalorder %s23, 4
      %p122 = pnand %p120, %p121
      %p123 = pneg %p122
      // Predicated region
      $region9: #{tpu_custom_call.1} parent=5 // pred_check
        _
      $region10: #{tpu_custom_call.1} parent=5 // pred_check_branch
        %125 = sbr.rel (%p122) target = $region12
      $region11: #{tpu_custom_call.1} parent=5 // pred_region
        %s126 = ssub.s32 %s23, 1
        // Predicated region
        $region13: #{tpu_custom_call.1} parent=11 // pred_check
          %p127 = pneg %p44
        $region14: #{tpu_custom_call.1} parent=11 // pred_check_branch
          %129 = sbr.rel (%p127) target = $region16
        $region15: #{tpu_custom_call.1} parent=11 // pred_region
          %131 = vsyncadd [#allocation5], 0
          %s133 = sshll.u32 %s1, 4
          %s134 = int_to_ptr.hbm [resolvable:$true] %s133
          %s135 = sshll.u32 [#allocation4], 4
          %s136 = int_to_ptr.vmem [resolvable:$true] %s135
          %138 = dma.hbm_to_vmem [thread:$0]  %s134, 512, %s136, [#allocation5]
        $region16: #{tpu_custom_call.1} parent=11 // pred_fallthru
          _
        // Predicated region
        $region17: #{tpu_custom_call.1} parent=11 // pred_check
          %p139 = pneg %p91
        $region18: #{tpu_custom_call.1} parent=11 // pred_check_branch
          %141 = sbr.rel (%p139) target = $region20
        $region19: #{tpu_custom_call.1} parent=11 // pred_region
          _
        $region20: #{tpu_custom_call.1} parent=11 // pred_fallthru
          _
      $region12: #{tpu_custom_call.1} parent=5 // pred_fallthru
        _
      %p142 = scmp.lt.s32.totalorder %s23, 3
      // Predicated region
      $region21: #{tpu_custom_call.1} parent=5 // pred_check
        %p143 = pneg %p142
      $region22: #{tpu_custom_call.1} parent=5 // pred_check_branch
        %145 = sbr.rel (%p143) target = $region24
      $region23: #{tpu_custom_call.1} parent=5 // pred_region
        // Predicated region
        $region25: #{tpu_custom_call.1} parent=23 // pred_check
          %p146 = pneg %p64
        $region26: #{tpu_custom_call.1} parent=23 // pred_check_branch
          %148 = sbr.rel (%p146) target = $region28
        $region27: #{tpu_custom_call.1} parent=23 // pred_region
          %s149 = sand.u32 %s54, 1
          %s150 = scalar_lea.sflag [#allocation8], %s149
          %s151 = sand.u32 %s54, 1
          %s152 = smul.addr %s151, 512
          %s153 = scalar_lea.vmem [#allocation7], %s152
          %155 = vsyncadd %s150, 0
          %s156 = smul.addr %s23, 128
          %s157 = smul.addr %s156, 4
          %s158 = scalar_lea.hbm %s2, %s157
          %s159 = sshll.u32 %s158, 4
          %s160 = int_to_ptr.hbm [resolvable:$true] %s159
          %s161 = sshll.u32 %s153, 4
          %s162 = int_to_ptr.vmem [resolvable:$true] %s161
          %167 = dma.hbm_to_vmem [thread:$0]  %s160, 8192, %s162, %s150, 64, 64, 4
        $region28: #{tpu_custom_call.1} parent=23 // pred_fallthru
          _
      $region24: #{tpu_custom_call.1} parent=5 // pred_fallthru
        _
      %p168 = scmp.le.s32.totalorder 1, %s23
      %p169 = scmp.lt.s32.totalorder %s23, 4
      %p170 = pnand %p168, %p169
      %p171 = pneg %p170
      // Predicated region
      $region29: #{tpu_custom_call.1} parent=5 // pred_check
        _
      $region30: #{tpu_custom_call.1} parent=5 // pred_check_branch
        %173 = sbr.rel (%p170) target = $region32
      $region31: #{tpu_custom_call.1} parent=5 // pred_region
        %s174 = ssub.s32 %s23, 1
        // Predicated region
        $region33: #{tpu_custom_call.1} parent=31 // pred_check
          %p175 = pneg %p44
        $region34: #{tpu_custom_call.1} parent=31 // pred_check_branch
          %177 = sbr.rel (%p175) target = $region36
        $region35: #{tpu_custom_call.1} parent=31 // pred_region
          %179 = dma.done [#allocation5], 512
        $region36: #{tpu_custom_call.1} parent=31 // pred_fallthru
          _
        %s180 = sand.u32 %s57, 1
        %s181 = scalar_lea.sflag [#allocation8], %s180
        %s182 = sand.u32 %s57, 1
        %s183 = smul.addr %s182, 512
        %s184 = scalar_lea.vmem [#allocation7], %s183
        // Predicated region
        $region37: #{tpu_custom_call.1} parent=31 // pred_check
          %p185 = pneg %p70
        $region38: #{tpu_custom_call.1} parent=31 // pred_check_branch
          %187 = sbr.rel (%p185) target = $region40
        $region39: #{tpu_custom_call.1} parent=31 // pred_region
          %189 = dma.done %s181, 8192
        $region40: #{tpu_custom_call.1} parent=31 // pred_fallthru
          _
        %p190 = pneg %p44
        %p191 = pneg %p41
        %s192 = sand.u32 %s57, 1
        %s193 = scalar_lea.sflag [#allocation8], %s192
        %s194 = sand.u32 %s57, 1
        %s195 = smul.addr %s194, 512
        %s196 = scalar_lea.vmem [#allocation7], %s195
        %p197 = pneg %p70
        %p198 = pneg %p67
        %p199 = pneg %p91
        %p200 = pneg %p88
        %p201 = pneg %p112
        %p202 = pneg %p109
        %p203 = scmp.eq.s32.totalorder %s28, 0
        // Predicated region
        $region41: #{tpu_custom_call.1} parent=31 // pred_check
          %p204 = pneg %p203
        $region42: #{tpu_custom_call.1} parent=31 // pred_check_branch
          %206 = sbr.rel (%p204) target = $region44
        $region43: #{tpu_custom_call.1} parent=31 // pred_region
          %207 = vst [vmem:[#allocation9] sm:$0xff] 0.0
        $region44: #{tpu_custom_call.1} parent=31 // pred_fallthru
          _
        %v208 = vld [vmem:[#allocation4] sm:$0xff]
        %v209 = vld [vmem:[#allocation4 + $0x8] sm:$0xff]
        %v210 = vld [vmem:[#allocation4 + $0x10] sm:$0xff]
        %v211 = vld [vmem:[#allocation4 + $0x18] sm:$0xff]
        %v212 = vld [vmem:[%s184] sm:$0xf]
        %v213 = vld [vmem:[%s184 + $0x4] sm:$0xf]
        %v214 = vld [vmem:[%s184 + $0x8] sm:$0xf]
        %v215 = vld [vmem:[%s184 + $0xc] sm:$0xf]
        %v216 = vld [vmem:[%s184 + $0x10] sm:$0xf]
        %v217 = vld [vmem:[%s184 + $0x14] sm:$0xf]
        %v218 = vld [vmem:[%s184 + $0x18] sm:$0xf]
        %v219 = vld [vmem:[%s184 + $0x1c] sm:$0xf]
        %v220 = vld [vmem:[%s184 + $0x20] sm:$0xf]
        %v221 = vld [vmem:[%s184 + $0x24] sm:$0xf]
        %v222 = vld [vmem:[%s184 + $0x28] sm:$0xf]
        %v223 = vld [vmem:[%s184 + $0x2c] sm:$0xf]
        %v224 = vld [vmem:[%s184 + $0x30] sm:$0xf]
        %v225 = vld [vmem:[%s184 + $0x34] sm:$0xf]
        %v226 = vld [vmem:[%s184 + $0x38] sm:$0xf]
        %v227 = vld [vmem:[%s184 + $0x3c] sm:$0xf]
        %v228 = vld [vmem:[%s184 + $0x40] sm:$0xf]
        %v229 = vld [vmem:[%s184 + $0x44] sm:$0xf]
        %v230 = vld [vmem:[%s184 + $0x48] sm:$0xf]
        %v231 = vld [vmem:[%s184 + $0x4c] sm:$0xf]
        %v232 = vld [vmem:[%s184 + $0x50] sm:$0xf]
        %v233 = vld [vmem:[%s184 + $0x54] sm:$0xf]
        %v234 = vld [vmem:[%s184 + $0x58] sm:$0xf]
        %v235 = vld [vmem:[%s184 + $0x5c] sm:$0xf]
        %v236 = vld [vmem:[%s184 + $0x60] sm:$0xf]
        %v237 = vld [vmem:[%s184 + $0x64] sm:$0xf]
        %v238 = vld [vmem:[%s184 + $0x68] sm:$0xf]
        %v239 = vld [vmem:[%s184 + $0x6c] sm:$0xf]
        %v240 = vld [vmem:[%s184 + $0x70] sm:$0xf]
        %v241 = vld [vmem:[%s184 + $0x74] sm:$0xf]
        %v242 = vld [vmem:[%s184 + $0x78] sm:$0xf]
        %v243 = vld [vmem:[%s184 + $0x7c] sm:$0xf]
        %v244 = vld [vmem:[%s184 + $0x80] sm:$0xf]
        %v245 = vld [vmem:[%s184 + $0x84] sm:$0xf]
        %v246 = vld [vmem:[%s184 + $0x88] sm:$0xf]
        %v247 = vld [vmem:[%s184 + $0x8c] sm:$0xf]
        %v248 = vld [vmem:[%s184 + $0x90] sm:$0xf]
        %v249 = vld [vmem:[%s184 + $0x94] sm:$0xf]
        %v250 = vld [vmem:[%s184 + $0x98] sm:$0xf]
        %v251 = vld [vmem:[%s184 + $0x9c] sm:$0xf]
        %v252 = vld [vmem:[%s184 + $0xa0] sm:$0xf]
        %v253 = vld [vmem:[%s184 + $0xa4] sm:$0xf]
        %v254 = vld [vmem:[%s184 + $0xa8] sm:$0xf]
        %v255 = vld [vmem:[%s184 + $0xac] sm:$0xf]
        %v256 = vld [vmem:[%s184 + $0xb0] sm:$0xf]
        %v257 = vld [vmem:[%s184 + $0xb4] sm:$0xf]
        %v258 = vld [vmem:[%s184 + $0xb8] sm:$0xf]
        %v259 = vld [vmem:[%s184 + $0xbc] sm:$0xf]
        %v260 = vld [vmem:[%s184 + $0xc0] sm:$0xf]
        %v261 = vld [vmem:[%s184 + $0xc4] sm:$0xf]
        %v262 = vld [vmem:[%s184 + $0xc8] sm:$0xf]
        %v263 = vld [vmem:[%s184 + $0xcc] sm:$0xf]
        %v264 = vld [vmem:[%s184 + $0xd0] sm:$0xf]
        %v265 = vld [vmem:[%s184 + $0xd4] sm:$0xf]
        %v266 = vld [vmem:[%s184 + $0xd8] sm:$0xf]
        %v267 = vld [vmem:[%s184 + $0xdc] sm:$0xf]
        %v268 = vld [vmem:[%s184 + $0xe0] sm:$0xf]
        %v269 = vld [vmem:[%s184 + $0xe4] sm:$0xf]
        %v270 = vld [vmem:[%s184 + $0xe8] sm:$0xf]
        %v271 = vld [vmem:[%s184 + $0xec] sm:$0xf]
        %v272 = vld [vmem:[%s184 + $0xf0] sm:$0xf]
        %v273 = vld [vmem:[%s184 + $0xf4] sm:$0xf]
        %v274 = vld [vmem:[%s184 + $0xf8] sm:$0xf]
        %v275 = vld [vmem:[%s184 + $0xfc] sm:$0xf]
        %v276 = vld [vmem:[%s184 + $0x100] sm:$0xf]
        %v277 = vld [vmem:[%s184 + $0x104] sm:$0xf]
        %v278 = vld [vmem:[%s184 + $0x108] sm:$0xf]
        %v279 = vld [vmem:[%s184 + $0x10c] sm:$0xf]
        %v280 = vld [vmem:[%s184 + $0x110] sm:$0xf]
        %v281 = vld [vmem:[%s184 + $0x114] sm:$0xf]
        %v282 = vld [vmem:[%s184 + $0x118] sm:$0xf]
        %v283 = vld [vmem:[%s184 + $0x11c] sm:$0xf]
        %v284 = vld [vmem:[%s184 + $0x120] sm:$0xf]
        %v285 = vld [vmem:[%s184 + $0x124] sm:$0xf]
        %v286 = vld [vmem:[%s184 + $0x128] sm:$0xf]
        %v287 = vld [vmem:[%s184 + $0x12c] sm:$0xf]
        %v288 = vld [vmem:[%s184 + $0x130] sm:$0xf]
        %v289 = vld [vmem:[%s184 + $0x134] sm:$0xf]
        %v290 = vld [vmem:[%s184 + $0x138] sm:$0xf]
        %v291 = vld [vmem:[%s184 + $0x13c] sm:$0xf]
        %v292 = vld [vmem:[%s184 + $0x140] sm:$0xf]
        %v293 = vld [vmem:[%s184 + $0x144] sm:$0xf]
        %v294 = vld [vmem:[%s184 + $0x148] sm:$0xf]
        %v295 = vld [vmem:[%s184 + $0x14c] sm:$0xf]
        %v296 = vld [vmem:[%s184 + $0x150] sm:$0xf]
        %v297 = vld [vmem:[%s184 + $0x154] sm:$0xf]
        %v298 = vld [vmem:[%s184 + $0x158] sm:$0xf]
        %v299 = vld [vmem:[%s184 + $0x15c] sm:$0xf]
        %v300 = vld [vmem:[%s184 + $0x160] sm:$0xf]
        %v301 = vld [vmem:[%s184 + $0x164] sm:$0xf]
        %v302 = vld [vmem:[%s184 + $0x168] sm:$0xf]
        %v303 = vld [vmem:[%s184 + $0x16c] sm:$0xf]
        %v304 = vld [vmem:[%s184 + $0x170] sm:$0xf]
        %v305 = vld [vmem:[%s184 + $0x174] sm:$0xf]
        %v306 = vld [vmem:[%s184 + $0x178] sm:$0xf]
        %v307 = vld [vmem:[%s184 + $0x17c] sm:$0xf]
        %v308 = vld [vmem:[%s184 + $0x180] sm:$0xf]
        %v309 = vld [vmem:[%s184 + $0x184] sm:$0xf]
        %v310 = vld [vmem:[%s184 + $0x188] sm:$0xf]
        %v311 = vld [vmem:[%s184 + $0x18c] sm:$0xf]
        %v312 = vld [vmem:[%s184 + $0x190] sm:$0xf]
        %v313 = vld [vmem:[%s184 + $0x194] sm:$0xf]
        %v314 = vld [vmem:[%s184 + $0x198] sm:$0xf]
        %v315 = vld [vmem:[%s184 + $0x19c] sm:$0xf]
        %v316 = vld [vmem:[%s184 + $0x1a0] sm:$0xf]
        %v317 = vld [vmem:[%s184 + $0x1a4] sm:$0xf]
        %v318 = vld [vmem:[%s184 + $0x1a8] sm:$0xf]
        %v319 = vld [vmem:[%s184 + $0x1ac] sm:$0xf]
        %v320 = vld [vmem:[%s184 + $0x1b0] sm:$0xf]
        %v321 = vld [vmem:[%s184 + $0x1b4] sm:$0xf]
        %v322 = vld [vmem:[%s184 + $0x1b8] sm:$0xf]
        %v323 = vld [vmem:[%s184 + $0x1bc] sm:$0xf]
        %v324 = vld [vmem:[%s184 + $0x1c0] sm:$0xf]
        %v325 = vld [vmem:[%s184 + $0x1c4] sm:$0xf]
        %v326 = vld [vmem:[%s184 + $0x1c8] sm:$0xf]
        %v327 = vld [vmem:[%s184 + $0x1cc] sm:$0xf]
        %v328 = vld [vmem:[%s184 + $0x1d0] sm:$0xf]
        %v329 = vld [vmem:[%s184 + $0x1d4] sm:$0xf]
        %v330 = vld [vmem:[%s184 + $0x1d8] sm:$0xf]
        %v331 = vld [vmem:[%s184 + $0x1dc] sm:$0xf]
        %v332 = vld [vmem:[%s184 + $0x1e0] sm:$0xf]
        %v333 = vld [vmem:[%s184 + $0x1e4] sm:$0xf]
        %v334 = vld [vmem:[%s184 + $0x1e8] sm:$0xf]
        %v335 = vld [vmem:[%s184 + $0x1ec] sm:$0xf]
        %v336 = vld [vmem:[%s184 + $0x1f0] sm:$0xf]
        %v337 = vld [vmem:[%s184 + $0x1f4] sm:$0xf]
        %v338 = vld [vmem:[%s184 + $0x1f8] sm:$0xf]
        %v339 = vld [vmem:[%s184 + $0x1fc] sm:$0xf]
        %v344 = vunpack.c.l.b16 %v208
        %v345 = vunpack.c.h.b16 %v208
        %v346 = vunpack.c.l.b16 %v209
        %v347 = vunpack.c.h.b16 %v209
        %v348 = vunpack.c.l.b16 %v210
        %v349 = vunpack.c.h.b16 %v210
        %v350 = vunpack.c.l.b16 %v211
        %v351 = vunpack.c.h.b16 %v211
        %v352 = vpack.c.b16 %v344, %v344
        %v353 = vpack.c.b16 %v345, %v345
        %v354 = vpack.c.b16 %v346, %v346
        %v355 = vpack.c.b16 %v347, %v347
        %v356 = vpack.c.b16 %v348, %v348
        %v357 = vpack.c.b16 %v349, %v349
        %v358 = vpack.c.b16 %v350, %v350
        %v359 = vpack.c.b16 %v351, %v351
        %v496 = vunpack.c.l.b16 %v212
        %v497 = vunpack.c.l.b16 %v213
        %v498 = vunpack.c.l.b16 %v214
        %v499 = vunpack.c.l.b16 %v215
        %v500 = vunpack.c.l.b16 %v216
        %v501 = vunpack.c.l.b16 %v217
        %v502 = vunpack.c.l.b16 %v218
        %v503 = vunpack.c.l.b16 %v219
        %v504 = vunpack.c.l.b16 %v220
        %v505 = vunpack.c.l.b16 %v221
        %v506 = vunpack.c.l.b16 %v222
        %v507 = vunpack.c.l.b16 %v223
        %v508 = vunpack.c.l.b16 %v224
        %v509 = vunpack.c.l.b16 %v225
        %v510 = vunpack.c.l.b16 %v226
        %v511 = vunpack.c.l.b16 %v227
        %v512 = vunpack.c.l.b16 %v228
        %v513 = vunpack.c.l.b16 %v229
        %v514 = vunpack.c.l.b16 %v230
        %v515 = vunpack.c.l.b16 %v231
        %v516 = vunpack.c.l.b16 %v232
        %v517 = vunpack.c.l.b16 %v233
        %v518 = vunpack.c.l.b16 %v234
        %v519 = vunpack.c.l.b16 %v235
        %v520 = vunpack.c.l.b16 %v236
        %v521 = vunpack.c.l.b16 %v237
        %v522 = vunpack.c.l.b16 %v238
        %v523 = vunpack.c.l.b16 %v239
        %v524 = vunpack.c.l.b16 %v240
        %v525 = vunpack.c.l.b16 %v241
        %v526 = vunpack.c.l.b16 %v242
        %v527 = vunpack.c.l.b16 %v243
        %v528 = vunpack.c.l.b16 %v244
        %v529 = vunpack.c.l.b16 %v245
        %v530 = vunpack.c.l.b16 %v246
        %v531 = vunpack.c.l.b16 %v247
        %v532 = vunpack.c.l.b16 %v248
        %v533 = vunpack.c.l.b16 %v249
        %v534 = vunpack.c.l.b16 %v250
        %v535 = vunpack.c.l.b16 %v251
        %v536 = vunpack.c.l.b16 %v252
        %v537 = vunpack.c.l.b16 %v253
        %v538 = vunpack.c.l.b16 %v254
        %v539 = vunpack.c.l.b16 %v255
        %v540 = vunpack.c.l.b16 %v256
        %v541 = vunpack.c.l.b16 %v257
        %v542 = vunpack.c.l.b16 %v258
        %v543 = vunpack.c.l.b16 %v259
        %v544 = vunpack.c.l.b16 %v260
        %v545 = vunpack.c.l.b16 %v261
        %v546 = vunpack.c.l.b16 %v262
        %v547 = vunpack.c.l.b16 %v263
        %v548 = vunpack.c.l.b16 %v264
        %v549 = vunpack.c.l.b16 %v265
        %v550 = vunpack.c.l.b16 %v266
        %v551 = vunpack.c.l.b16 %v267
        %v552 = vunpack.c.l.b16 %v268
        %v553 = vunpack.c.l.b16 %v269
        %v554 = vunpack.c.l.b16 %v270
        %v555 = vunpack.c.l.b16 %v271
        %v556 = vunpack.c.l.b16 %v272
        %v557 = vunpack.c.l.b16 %v273
        %v558 = vunpack.c.l.b16 %v274
        %v559 = vunpack.c.l.b16 %v275
        %v560 = vunpack.c.l.b16 %v276
        %v561 = vunpack.c.l.b16 %v277
        %v562 = vunpack.c.l.b16 %v278
        %v563 = vunpack.c.l.b16 %v279
        %v564 = vunpack.c.l.b16 %v280
        %v565 = vunpack.c.l.b16 %v281
        %v566 = vunpack.c.l.b16 %v282
        %v567 = vunpack.c.l.b16 %v283
        %v568 = vunpack.c.l.b16 %v284
        %v569 = vunpack.c.l.b16 %v285
        %v570 = vunpack.c.l.b16 %v286
        %v571 = vunpack.c.l.b16 %v287
        %v572 = vunpack.c.l.b16 %v288
        %v573 = vunpack.c.l.b16 %v289
        %v574 = vunpack.c.l.b16 %v290
        %v575 = vunpack.c.l.b16 %v291
        %v576 = vunpack.c.l.b16 %v292
        %v577 = vunpack.c.l.b16 %v293
        %v578 = vunpack.c.l.b16 %v294
        %v579 = vunpack.c.l.b16 %v295
        %v580 = vunpack.c.l.b16 %v296
        %v581 = vunpack.c.l.b16 %v297
        %v582 = vunpack.c.l.b16 %v298
        %v583 = vunpack.c.l.b16 %v299
        %v584 = vunpack.c.l.b16 %v300
        %v585 = vunpack.c.l.b16 %v301
        %v586 = vunpack.c.l.b16 %v302
        %v587 = vunpack.c.l.b16 %v303
        %v588 = vunpack.c.l.b16 %v304
        %v589 = vunpack.c.l.b16 %v305
        %v590 = vunpack.c.l.b16 %v306
        %v591 = vunpack.c.l.b16 %v307
        %v592 = vunpack.c.l.b16 %v308
        %v593 = vunpack.c.l.b16 %v309
        %v594 = vunpack.c.l.b16 %v310
        %v595 = vunpack.c.l.b16 %v311
        %v596 = vunpack.c.l.b16 %v312
        %v597 = vunpack.c.l.b16 %v313
        %v598 = vunpack.c.l.b16 %v314
        %v599 = vunpack.c.l.b16 %v315
        %v600 = vunpack.c.l.b16 %v316
        %v601 = vunpack.c.l.b16 %v317
        %v602 = vunpack.c.l.b16 %v318
        %v603 = vunpack.c.l.b16 %v319
        %v604 = vunpack.c.l.b16 %v320
        %v605 = vunpack.c.l.b16 %v321
        %v606 = vunpack.c.l.b16 %v322
        %v607 = vunpack.c.l.b16 %v323
        %v608 = vunpack.c.l.b16 %v324
        %v609 = vunpack.c.l.b16 %v325
        %v610 = vunpack.c.l.b16 %v326
        %v611 = vunpack.c.l.b16 %v327
        %v612 = vunpack.c.l.b16 %v328
        %v613 = vunpack.c.l.b16 %v329
        %v614 = vunpack.c.l.b16 %v330
        %v615 = vunpack.c.l.b16 %v331
        %v616 = vunpack.c.l.b16 %v332
        %v617 = vunpack.c.l.b16 %v333
        %v618 = vunpack.c.l.b16 %v334
        %v619 = vunpack.c.l.b16 %v335
        %v620 = vunpack.c.l.b16 %v336
        %v621 = vunpack.c.l.b16 %v337
        %v622 = vunpack.c.l.b16 %v338
        %v623 = vunpack.c.l.b16 %v339
        %v624 = vpack.c.b16 %v497, %v496
        %v625 = vpack.c.b16 %v499, %v498
        %v626 = vpack.c.b16 %v501, %v500
        %v627 = vpack.c.b16 %v503, %v502
        %v628 = vpack.c.b16 %v505, %v504
        %v629 = vpack.c.b16 %v507, %v506
        %v630 = vpack.c.b16 %v509, %v508
        %v631 = vpack.c.b16 %v511, %v510
        %v632 = vpack.c.b16 %v513, %v512
        %v633 = vpack.c.b16 %v515, %v514
        %v634 = vpack.c.b16 %v517, %v516
        %v635 = vpack.c.b16 %v519, %v518
        %v636 = vpack.c.b16 %v521, %v520
        %v637 = vpack.c.b16 %v523, %v522
        %v638 = vpack.c.b16 %v525, %v524
        %v639 = vpack.c.b16 %v527, %v526
        %v640 = vpack.c.b16 %v529, %v528
        %v641 = vpack.c.b16 %v531, %v530
        %v642 = vpack.c.b16 %v533, %v532
        %v643 = vpack.c.b16 %v535, %v534
        %v644 = vpack.c.b16 %v537, %v536
        %v645 = vpack.c.b16 %v539, %v538
        %v646 = vpack.c.b16 %v541, %v540
        %v647 = vpack.c.b16 %v543, %v542
        %v648 = vpack.c.b16 %v545, %v544
        %v649 = vpack.c.b16 %v547, %v546
        %v650 = vpack.c.b16 %v549, %v548
        %v651 = vpack.c.b16 %v551, %v550
        %v652 = vpack.c.b16 %v553, %v552
        %v653 = vpack.c.b16 %v555, %v554
        %v654 = vpack.c.b16 %v557, %v556
        %v655 = vpack.c.b16 %v559, %v558
        %v656 = vpack.c.b16 %v561, %v560
        %v657 = vpack.c.b16 %v563, %v562
        %v658 = vpack.c.b16 %v565, %v564
        %v659 = vpack.c.b16 %v567, %v566
        %v660 = vpack.c.b16 %v569, %v568
        %v661 = vpack.c.b16 %v571, %v570
        %v662 = vpack.c.b16 %v573, %v572
        %v663 = vpack.c.b16 %v575, %v574
        %v664 = vpack.c.b16 %v577, %v576
        %v665 = vpack.c.b16 %v579, %v578
        %v666 = vpack.c.b16 %v581, %v580
        %v667 = vpack.c.b16 %v583, %v582
        %v668 = vpack.c.b16 %v585, %v584
        %v669 = vpack.c.b16 %v587, %v586
        %v670 = vpack.c.b16 %v589, %v588
        %v671 = vpack.c.b16 %v591, %v590
        %v672 = vpack.c.b16 %v593, %v592
        %v673 = vpack.c.b16 %v595, %v594
        %v674 = vpack.c.b16 %v597, %v596
        %v675 = vpack.c.b16 %v599, %v598
        %v676 = vpack.c.b16 %v601, %v600
        %v677 = vpack.c.b16 %v603, %v602
        %v678 = vpack.c.b16 %v605, %v604
        %v679 = vpack.c.b16 %v607, %v606
        %v680 = vpack.c.b16 %v609, %v608
        %v681 = vpack.c.b16 %v611, %v610
        %v682 = vpack.c.b16 %v613, %v612
        %v683 = vpack.c.b16 %v615, %v614
        %v684 = vpack.c.b16 %v617, %v616
        %v685 = vpack.c.b16 %v619, %v618
        %v686 = vpack.c.b16 %v621, %v620
        %v687 = vpack.c.b16 %v623, %v622
        %752 = vmatpush.bf16.msra.mxu0 %v631
        %753 = vmatpush.bf16.msra.mxu0 %v630
        %754 = vmatpush.bf16.msra.mxu0 %v629
        %755 = vmatpush.bf16.msra.mxu0 %v628
        %756 = vmatpush.bf16.msra.mxu0 %v627
        %757 = vmatpush.bf16.msra.mxu0 %v626
        %758 = vmatpush.bf16.msra.mxu0 %v625
        %759 = vmatpush.bf16.msra.mxu0 %v624
        %760 = vmatmul.bf16.gmra.mxu0 %v352
        %v761 = vpop.f32.mrf.mxu0
        %v762 = vadd.f32 0.0, %v761
        %v763 = vpop.f32.mrf.mxu0
        %764 = vdwg.mxu0
        %765 = vmatpush.bf16.msra.mxu0 %v639
        %766 = vmatpush.bf16.msra.mxu0 %v638
        %767 = vmatpush.bf16.msra.mxu0 %v637
        %768 = vmatpush.bf16.msra.mxu0 %v636
        %769 = vmatpush.bf16.msra.mxu0 %v635
        %770 = vmatpush.bf16.msra.mxu0 %v634
        %771 = vmatpush.bf16.msra.mxu0 %v633
        %772 = vmatpush.bf16.msra.mxu0 %v632
        %773 = vmatmul.bf16.gmra.mxu0 %v353
        %v774 = vpop.f32.mrf.mxu0
        %v775 = vadd.f32 %v762, %v774
        %v776 = vpop.f32.mrf.mxu0
        %777 = vdwg.mxu0
        %778 = vmatpush.bf16.msra.mxu0 %v647
        %779 = vmatpush.bf16.msra.mxu0 %v646
        %780 = vmatpush.bf16.msra.mxu0 %v645
        %781 = vmatpush.bf16.msra.mxu0 %v644
        %782 = vmatpush.bf16.msra.mxu0 %v643
        %783 = vmatpush.bf16.msra.mxu0 %v642
        %784 = vmatpush.bf16.msra.mxu0 %v641
        %785 = vmatpush.bf16.msra.mxu0 %v640
        %786 = vmatmul.bf16.gmra.mxu0 %v354
        %v787 = vpop.f32.mrf.mxu0
        %v788 = vadd.f32 %v775, %v787
        %v789 = vpop.f32.mrf.mxu0
        %790 = vdwg.mxu0
        %791 = vmatpush.bf16.msra.mxu0 %v655
        %792 = vmatpush.bf16.msra.mxu0 %v654
        %793 = vmatpush.bf16.msra.mxu0 %v653
        %794 = vmatpush.bf16.msra.mxu0 %v652
        %795 = vmatpush.bf16.msra.mxu0 %v651
        %796 = vmatpush.bf16.msra.mxu0 %v650
        %797 = vmatpush.bf16.msra.mxu0 %v649
        %798 = vmatpush.bf16.msra.mxu0 %v648
        %799 = vmatmul.bf16.gmra.mxu0 %v355
        %v800 = vpop.f32.mrf.mxu0
        %v801 = vadd.f32 %v788, %v800
        %v802 = vpop.f32.mrf.mxu0
        %803 = vdwg.mxu0
        %804 = vmatpush.bf16.msra.mxu0 %v663
        %805 = vmatpush.bf16.msra.mxu0 %v662
        %806 = vmatpush.bf16.msra.mxu0 %v661
        %807 = vmatpush.bf16.msra.mxu0 %v660
        %808 = vmatpush.bf16.msra.mxu0 %v659
        %809 = vmatpush.bf16.msra.mxu0 %v658
        %810 = vmatpush.bf16.msra.mxu0 %v657
        %811 = vmatpush.bf16.msra.mxu0 %v656
        %812 = vmatmul.bf16.gmra.mxu0 %v356
        %v813 = vpop.f32.mrf.mxu0
        %v814 = vadd.f32 %v801, %v813
        %v815 = vpop.f32.mrf.mxu0
        %816 = vdwg.mxu0
        %817 = vmatpush.bf16.msra.mxu0 %v671
        %818 = vmatpush.bf16.msra.mxu0 %v670
        %819 = vmatpush.bf16.msra.mxu0 %v669
        %820 = vmatpush.bf16.msra.mxu0 %v668
        %821 = vmatpush.bf16.msra.mxu0 %v667
        %822 = vmatpush.bf16.msra.mxu0 %v666
        %823 = vmatpush.bf16.msra.mxu0 %v665
        %824 = vmatpush.bf16.msra.mxu0 %v664
        %825 = vmatmul.bf16.gmra.mxu0 %v357
        %v826 = vpop.f32.mrf.mxu0
        %v827 = vadd.f32 %v814, %v826
        %v828 = vpop.f32.mrf.mxu0
        %829 = vdwg.mxu0
        %830 = vmatpush.bf16.msra.mxu0 %v679
        %831 = vmatpush.bf16.msra.mxu0 %v678
        %832 = vmatpush.bf16.msra.mxu0 %v677
        %833 = vmatpush.bf16.msra.mxu0 %v676
        %834 = vmatpush.bf16.msra.mxu0 %v675
        %835 = vmatpush.bf16.msra.mxu0 %v674
        %836 = vmatpush.bf16.msra.mxu0 %v673
        %837 = vmatpush.bf16.msra.mxu0 %v672
        %838 = vmatmul.bf16.gmra.mxu0 %v358
        %v839 = vpop.f32.mrf.mxu0
        %v840 = vadd.f32 %v827, %v839
        %v841 = vpop.f32.mrf.mxu0
        %842 = vdwg.mxu0
        %843 = vmatpush.bf16.msra.mxu0 %v687
        %844 = vmatpush.bf16.msra.mxu0 %v686
        %845 = vmatpush.bf16.msra.mxu0 %v685
        %846 = vmatpush.bf16.msra.mxu0 %v684
        %847 = vmatpush.bf16.msra.mxu0 %v683
        %848 = vmatpush.bf16.msra.mxu0 %v682
        %849 = vmatpush.bf16.msra.mxu0 %v681
        %850 = vmatpush.bf16.msra.mxu0 %v680
        %851 = vmatmul.bf16.gmra.mxu0 %v359
        %v852 = vpop.f32.mrf.mxu0
        %v853 = vadd.f32 %v840, %v852
        %v854 = vpop.f32.mrf.mxu0
        %855 = vdwg.mxu0
        %v856 = vld [vmem:[#allocation9] sm:$0xff]
        %s857 = sld [smem:[#allocation3 + %s28]]
        %v858 = vstv %s857
        %v859 = vmul.f32 %v858, %v853
        %v860 = vadd.f32 %v856, %v859
        %861 = vst [vmem:[#allocation9] sm:$0xff] %v860
        %p862 = scmp.eq.s32.totalorder %s28, 2
        // Predicated region
        $region45: #{tpu_custom_call.1} parent=31 // pred_check
          %p863 = pneg %p862
        $region46: #{tpu_custom_call.1} parent=31 // pred_check_branch
          %865 = sbr.rel (%p863) target = $region48
        $region47: #{tpu_custom_call.1} parent=31 // pred_region
          %v866 = vld [vmem:[#allocation9] sm:$0xff]
          %v867 = vld [vmem:[%s3] sm:$0x1]
          %v869 = vperm.slane %v867, 0
          %v871 = vadd.f32 %v866, %v869
          %872 = vst [vmem:[#allocation9] sm:$0xff] %v871
        $region48: #{tpu_custom_call.1} parent=31 // pred_fallthru
          _
        // Predicated region
        $region49: #{tpu_custom_call.1} parent=31 // pred_check
          %p873 = pneg %p109
        $region50: #{tpu_custom_call.1} parent=31 // pred_check_branch
          %875 = sbr.rel (%p873) target = $region52
        $region51: #{tpu_custom_call.1} parent=31 // pred_region
          %877 = vsyncadd [#allocation6], 0
          %s879 = sshll.u32 [#allocation9], 4
          %s880 = int_to_ptr.vmem [resolvable:$true] %s879
          %s881 = sshll.u32 %s4, 4
          %s882 = int_to_ptr.hbm [resolvable:$true] %s881
          %884 = dma.vmem_to_hbm [thread:$0]  %s880, 128, %s882, [#allocation6]
        $region52: #{tpu_custom_call.1} parent=31 // pred_fallthru
          _
        // Predicated region
        $region53: #{tpu_custom_call.1} parent=31 // pred_check
          %p885 = pneg %p109
        $region54: #{tpu_custom_call.1} parent=31 // pred_check_branch
          %887 = sbr.rel (%p885) target = $region56
        $region55: #{tpu_custom_call.1} parent=31 // pred_region
          %889 = dma.done [#allocation6], 128
        $region56: #{tpu_custom_call.1} parent=31 // pred_fallthru
          _
      $region32: #{tpu_custom_call.1} parent=5 // pred_fallthru
        _
      %p890 = scmp.le.s32.totalorder 2, %s23
      // Predicated region
      $region57: #{tpu_custom_call.1} parent=5 // pred_check
        %p891 = pneg %p890
      $region58: #{tpu_custom_call.1} parent=5 // pred_check_branch
        %893 = sbr.rel (%p891) target = $region60
      $region59: #{tpu_custom_call.1} parent=5 // pred_region
        %s894 = ssub.s32 %s23, 2
      $region60: #{tpu_custom_call.1} parent=5 // pred_fallthru
        _
    $region6: #{tpu_custom_call.1} parent=1 // loop_footer
      %s27 = sadd.s32 1, %s23
    $region7: #{tpu_custom_call.1} parent=1 // loop_footer_branch
      %22 = sbr.rel target = $region3
    $region8: #{tpu_custom_call.1} parent=1 // loop_exit
      _
    %895 = vsyncpa [#allocation5], 1
    %s896 = scalar_lea.sflag [#allocation5], 1
    %897 = vsyncpa %s896, 1
    %898 = vsyncpa [#allocation8], 1
    %s899 = scalar_lea.sflag [#allocation8], 1
    %900 = vsyncpa %s899, 1
    %901 = vsyncpa [#allocation6], 1
    %s902 = scalar_lea.sflag [#allocation6], 1
    %903 = vsyncpa %s902, 1

</llo_original>
